<compile_context>
chip_gen: v6e
topology: v6e:2x2x1
jax: 0.10.0
libtpu: 0.0.40
codegen_flags: <defaults>
</compile_context>

<pallas_src>
import functools

import jax
import jax.numpy as jnp
from jax.experimental import pallas as pl
from jax.experimental.pallas import tpu as pltpu

LANE = 128
TARGET_BLOCK_BYTES = 2 << 20          # ~2 MiB per-input block (4096 f32 rows)
VMEM_LIMIT_BYTES = 32 * 1024 * 1024   # blocks (<= ~8 MiB w/ double buffering) + slack


def _min_sublane(dtype):
    """Packed-dtype minimum sublane tile: f32 -> 8, bf16 -> 16, int8/fp8 -> 32."""
    return max(8, 32 // max(1, jnp.dtype(dtype).itemsize))


def _detect_num_cores():
    """2-way core split only on chips with 2 TensorCores per device (v7x)."""
    try:
        kind = jax.devices()[0].device_kind.lower()
    except Exception:
        return 1
    return 2 if "v7" in kind else 1


def _as_group_slab(x, sub):
    """Flatten to a (groups, sub, 128) slab.

    Copy-free reshape when x.size % (sub*128) == 0; otherwise the flat tail is
    zero-padded once. Since BOTH slabs get zero padding, diff == 0 there and the
    padded elements contribute nothing to either raw sum.
    """
    n = x.size
    chunk = LANE * sub
    flat = x.reshape(-1)
    pad = (-n) % chunk
    if pad:
        flat = jnp.pad(flat, (0, pad))
    return flat.reshape(-1, sub, LANE)


def _content_loss_sum_kernel(t_ref, p_ref, l1_ref, l2_ref, *,
                             steps, g_tile, n_groups, has_tail):
    """Accumulate raw sum(|diff|) and sum(diff^2) at (sub, 128) vreg granularity.

    t_ref, p_ref : VMEM (g_tile, sub, 128) blocks of the flattened target / pred.
    l1_ref/l2_ref: VMEM (1, sub, 128) f32 per-core accumulators; their block index
                   depends only on the core axis, so they stay resident across the
                   reduction ("arbitrary") axis.
    """
    i = pl.program_id(1)

    @pl.when(i == 0)
    def _init():
        l1_ref[...] = jnp.zeros_like(l1_ref)
        l2_ref[...] = jnp.zeros_like(l2_ref)

    diff = t_ref[...].astype(jnp.float32) - p_ref[...].astype(jnp.float32)

    def accumulate(d):
        # Reduce only over the leading (vreg-block) axis -> pure VPU adds.
        l1_ref[...] += jnp.sum(jnp.abs(d), axis=0)[None]
        l2_ref[...] += jnp.sum(d * d, axis=0)[None]

    if not has_tail:
        accumulate(diff)
    else:
        c = pl.program_id(0)
        g0 = (c * steps + i) * g_tile
        is_tail = g0 + g_tile > n_groups   # at most one (the final) block is partial

        @pl.when(jnp.logical_not(is_tail))
        def _full():
            accumulate(diff)

        @pl.when(is_tail)
        def _tail():
            gid = g0 + jax.lax.broadcasted_iota(jnp.int32, (g_tile, 1, 1), 0)
            accumulate(jnp.where(gid < n_groups, diff, 0.0))


def content_loss_pallas(pred, target, lambda_l1, lambda_l2, num_cores=None):
    """Equivalent of ContentLoss.forward given an already-computed `pred`."""
    assert pred.shape == target.shape, "L1Loss/MSELoss require matching shapes"
    n = pred.size

    sub = max(_min_sublane(pred.dtype), _min_sublane(target.dtype))
    t_slab = _as_group_slab(target, sub)
    p_slab = _as_group_slab(pred, sub)
    groups = t_slab.shape[0]

    if num_cores is None:
        num_cores = _detect_num_cores()

    itemsize = max(jnp.dtype(pred.dtype).itemsize, jnp.dtype(target.dtype).itemsize)
    g_max = max(1, TARGET_BLOCK_BYTES // (sub * LANE * itemsize))

    # Tile so that num_cores * steps blocks exactly cover the slab (balanced
    # g_tile) => no clamped / duplicated block reads, at most one partial block.
    n_blocks0 = pl.cdiv(groups, min(g_max, pl.cdiv(groups, num_cores)))
    steps = pl.cdiv(n_blocks0, num_cores)
    g_tile = pl.cdiv(groups, num_cores * steps)
    if (num_cores * steps - 1) * g_tile >= groups:
        # Rare corner where the core split would create a block starting past the
        # slab end; a single-core chunking is provably in-bounds.
        num_cores = 1
        steps = pl.cdiv(groups, g_tile)
    has_tail = (num_cores * steps * g_tile != groups)

    kernel = functools.partial(
        _content_loss_sum_kernel,
        steps=steps, g_tile=g_tile, n_groups=groups, has_tail=has_tail)

    in_map = lambda c, i: (c * steps + i, 0, 0)
    out_map = lambda c, i: (c, 0, 0)
    part_sds = jax.ShapeDtypeStruct((num_cores, sub, LANE), jnp.float32)

    if num_cores > 1 and hasattr(pltpu, "CORE_PARALLEL"):
        # v7x: make sure the size-2 leading axis is actually sharded across the 2 TCs.
        dim_sem = (pltpu.CORE_PARALLEL, pltpu.ARBITRARY)
    else:
        dim_sem = ("parallel", "arbitrary")

    # TODO(synk): for cheap / pointwise producers of `pred`, fusing the diff into
    # the input pipeline (allow_input_fusion or computing pred in-kernel) would
    # drop one of the three HBM passes; kept un-fused since `model` is arbitrary.
    l1_part, l2_part = pl.pallas_call(
        kernel,
        out_shape=(part_sds, part_sds),
        grid_spec=pltpu.PrefetchScalarGridSpec(
            num_scalar_prefetch=0,
            grid=(num_cores, steps),
            in_specs=[pl.BlockSpec((g_tile, sub, LANE), in_map),
                      pl.BlockSpec((g_tile, sub, LANE), in_map)],
            out_specs=(pl.BlockSpec((1, sub, LANE), out_map),
                       pl.BlockSpec((1, sub, LANE), out_map)),
        ),
        compiler_params=pltpu.CompilerParams(
            dimension_semantics=dim_sem,
            vmem_limit_bytes=VMEM_LIMIT_BYTES),
    )(t_slab, p_slab)

    # Finalize once: cross-sublane/lane + cross-core reduce, 1/N scale, lambda combine.
    inv_n = 1.0 / float(n)
    loss_l1 = jnp.sum(l1_part) * inv_n
    loss_l2 = jnp.sum(l2_part) * inv_n
    loss = loss_l1 * lambda_l1 + loss_l2 * lambda_l2
    return loss, {"loss_l1": loss_l1, "loss_l2": loss_l2}


class ContentLossPallas:
    """Mirrors ContentLoss(args).forward(model, input, target)."""

    def __init__(self, lambda_l1, lambda_l2):
        self.lambda_l1 = float(lambda_l1)
        self.lambda_l2 = float(lambda_l2)
        self.loss_names = ["loss_l1", "loss_l2"]

    def forward(self, model, inp, target):
        pred = model(inp)   # arbitrary external callable -> plain JAX glue
        return content_loss_pallas(pred, target, self.lambda_l1, self.lambda_l2)


def make_toy_model(channels, key):
    """Deterministic synthetic 'model': a pointwise (1x1 conv) channel mix in NCHW."""
    w = jax.random.normal(key, (channels, channels), dtype=jnp.float32) * 0.1

    def model(x):  # x: [B, C, H, W]
        return jnp.einsum("oc,bchw->bohw", w, x)

    return model


if __name__ == "__main__":
    key = jax.random.PRNGKey(0)
    k_in, k_tgt, k_w = jax.random.split(key, 3)

    B, C, H, W = 2, 4, 16, 16  # NCHW, matches PyTorch conv-style inputs
    x = jax.random.normal(k_in, (B, C, H, W), dtype=jnp.float32)
    target = jax.random.normal(k_tgt, (B, C, H, W), dtype=jnp.float32)

    lambda_l1, lambda_l2 = 1.0, 10.0
    criterion = ContentLossPallas(lambda_l1, lambda_l2)
    model = make_toy_model(C, k_w)

    loss, logs = criterion.forward(model, x, target)
    loss = jax.block_until_ready(loss)
    logs = jax.tree_util.tree_map(jax.block_until_ready, logs)

    # Reference check against plain JAX (same math as torch.nn.L1Loss/MSELoss).
    pred = model(x)
    ref_l1 = jnp.mean(jnp.abs(target - pred))
    ref_l2 = jnp.mean((target - pred) ** 2)
    ref_loss = ref_l1 * lambda_l1 + ref_l2 * lambda_l2
    assert jnp.allclose(logs["loss_l1"], ref_l1, rtol=1e-4, atol=1e-5)
    assert jnp.allclose(logs["loss_l2"], ref_l2, rtol=1e-4, atol=1e-5)
    assert jnp.allclose(loss, ref_loss, rtol=1e-4, atol=1e-5)

    print("KERNEL_OK")
</pallas_src>

<mosaic_0001>
module attributes {stable_mosaic.version = 11 : i64} {
  func.func @_content_loss_sum_kernel(%arg0: i32, %arg1: i32, %arg2: memref<2x8x128xf32, #tpu.memory_space<vmem>>, %arg3: memref<2x8x128xf32, #tpu.memory_space<vmem>>, %arg4: memref<1x8x128xf32, #tpu.memory_space<vmem>>, %arg5: memref<1x8x128xf32, #tpu.memory_space<vmem>>) attributes {dimension_semantics = [#tpu.dimension_semantics<parallel>, #tpu.dimension_semantics<arbitrary>], iteration_bounds = array<i64: 1, 1>, scalar_prefetch = 0 : i64, scratch_operands = 0 : i64, tpu.core_type = #tpu.core_type<tc>, window_params = [{transform_indices = @transform_0, window_bounds = array<i64: 2, 8, 128>}, {transform_indices = @transform_1, window_bounds = array<i64: 2, 8, 128>}, {transform_indices = @transform_2, window_bounds = array<i64: 1, 8, 128>}, {transform_indices = @transform_3, window_bounds = array<i64: 1, 8, 128>}]} {
    %c0_i32 = arith.constant 0 : i32
    %0 = arith.cmpi eq, %arg1, %c0_i32 : i32
    %1 = arith.extui %0 : i1 to i32
    %c0_i32_0 = arith.constant 0 : i32
    %2 = arith.cmpi ne, %1, %c0_i32_0 : i32
    scf.if %2 {
      %cst_19 = arith.constant 0.000000e+00 : f32
      %18 = vector.broadcast %cst_19 : f32 to vector<1x8x128xf32>
      %c0_20 = arith.constant 0 : index
      %c0_21 = arith.constant 0 : index
      %c0_22 = arith.constant 0 : index
      %19 = vector.load %arg4[%c0_20, %c0_21, %c0_22] : memref<1x8x128xf32, #tpu.memory_space<vmem>>, vector<1x8x128xf32>
      tpu.vector_store %arg4[%c0_20, %c0_21, %c0_22], %18 {strides = array<i32>} : memref<1x8x128xf32, #tpu.memory_space<vmem>>, vector<1x8x128xf32>,
      %cst_23 = arith.constant 0.000000e+00 : f32
      %20 = vector.broadcast %cst_23 : f32 to vector<1x8x128xf32>
      %c0_24 = arith.constant 0 : index
      %c0_25 = arith.constant 0 : index
      %c0_26 = arith.constant 0 : index
      %21 = vector.load %arg5[%c0_24, %c0_25, %c0_26] : memref<1x8x128xf32, #tpu.memory_space<vmem>>, vector<1x8x128xf32>
      tpu.vector_store %arg5[%c0_24, %c0_25, %c0_26], %20 {strides = array<i32>} : memref<1x8x128xf32, #tpu.memory_space<vmem>>, vector<1x8x128xf32>,
    } else {
    }
    %c0 = arith.constant 0 : index
    %c0_1 = arith.constant 0 : index
    %c0_2 = arith.constant 0 : index
    %3 = vector.load %arg2[%c0, %c0_1, %c0_2] : memref<2x8x128xf32, #tpu.memory_space<vmem>>, vector<2x8x128xf32>
    %c0_3 = arith.constant 0 : index
    %c0_4 = arith.constant 0 : index
    %c0_5 = arith.constant 0 : index
    %4 = vector.load %arg3[%c0_3, %c0_4, %c0_5] : memref<2x8x128xf32, #tpu.memory_space<vmem>>, vector<2x8x128xf32>
    %5 = arith.subf %3, %4 : vector<2x8x128xf32>
    %c0_6 = arith.constant 0 : index
    %c0_7 = arith.constant 0 : index
    %c0_8 = arith.constant 0 : index
    %6 = vector.load %arg4[%c0_6, %c0_7, %c0_8] : memref<1x8x128xf32, #tpu.memory_space<vmem>>, vector<1x8x128xf32>
    %7 = math.absf %5 : vector<2x8x128xf32>
    %cst = arith.constant dense<0.000000e+00> : vector<8x128xf32>
    %8 = vector.multi_reduction <add>, %7, %cst [0] : vector<2x8x128xf32> to vector<8x128xf32>
    %9 = vector.shape_cast %8 : vector<8x128xf32> to vector<1x8x128xf32>
    %10 = arith.addf %6, %9 : vector<1x8x128xf32>
    %c0_9 = arith.constant 0 : index
    %c0_10 = arith.constant 0 : index
    %c0_11 = arith.constant 0 : index
    %11 = vector.load %arg4[%c0_9, %c0_10, %c0_11] : memref<1x8x128xf32, #tpu.memory_space<vmem>>, vector<1x8x128xf32>
    tpu.vector_store %arg4[%c0_9, %c0_10, %c0_11], %10 {strides = array<i32>} : memref<1x8x128xf32, #tpu.memory_space<vmem>>, vector<1x8x128xf32>,
    %c0_12 = arith.constant 0 : index
    %c0_13 = arith.constant 0 : index
    %c0_14 = arith.constant 0 : index
    %12 = vector.load %arg5[%c0_12, %c0_13, %c0_14] : memref<1x8x128xf32, #tpu.memory_space<vmem>>, vector<1x8x128xf32>
    %13 = arith.mulf %5, %5 : vector<2x8x128xf32>
    %cst_15 = arith.constant dense<0.000000e+00> : vector<8x128xf32>
    %14 = vector.multi_reduction <add>, %13, %cst_15 [0] : vector<2x8x128xf32> to vector<8x128xf32>
    %15 = vector.shape_cast %14 : vector<8x128xf32> to vector<1x8x128xf32>
    %16 = arith.addf %12, %15 : vector<1x8x128xf32>
    %c0_16 = arith.constant 0 : index
    %c0_17 = arith.constant 0 : index
    %c0_18 = arith.constant 0 : index
    %17 = vector.load %arg5[%c0_16, %c0_17, %c0_18] : memref<1x8x128xf32, #tpu.memory_space<vmem>>, vector<1x8x128xf32>
    tpu.vector_store %arg5[%c0_16, %c0_17, %c0_18], %16 {strides = array<i32>} : memref<1x8x128xf32, #tpu.memory_space<vmem>>, vector<1x8x128xf32>,
    return
  }
  func.func @transform_0(%arg0: i32, %arg1: i32) -> (i32, i32, i32) {
    %c1_i32 = arith.constant 1 : i32
    %0 = arith.muli %arg0, %c1_i32 : i32
    %1 = arith.addi %0, %arg1 : i32
    %c0_i32 = arith.constant 0 : i32
    %c0_i32_0 = arith.constant 0 : i32
    %c0_i32_1 = arith.constant 0 : i32
    return %1, %c0_i32, %c0_i32_0 : i32, i32, i32
  }
  func.func @transform_1(%arg0: i32, %arg1: i32) -> (i32, i32, i32) {
    %c1_i32 = arith.constant 1 : i32
    %0 = arith.muli %arg0, %c1_i32 : i32
    %1 = arith.addi %0, %arg1 : i32
    %c0_i32 = arith.constant 0 : i32
    %c0_i32_0 = arith.constant 0 : i32
    %c0_i32_1 = arith.constant 0 : i32
    return %1, %c0_i32, %c0_i32_0 : i32, i32, i32
  }
  func.func @transform_2(%arg0: i32, %arg1: i32) -> (i32, i32, i32) {
    %c0_i32 = arith.constant 0 : i32
    %c0_i32_0 = arith.constant 0 : i32
    %c0_i32_1 = arith.constant 0 : i32
    return %arg0, %c0_i32, %c0_i32_0 : i32, i32, i32
  }
  func.func @transform_3(%arg0: i32, %arg1: i32) -> (i32, i32, i32) {
    %c0_i32 = arith.constant 0 : i32
    %c0_i32_0 = arith.constant 0 : i32
    %c0_i32_1 = arith.constant 0 : i32
    return %arg0, %c0_i32, %c0_i32_0 : i32, i32, i32
  }
}

</mosaic_0001>

<llo_original>
// kernel: tpu_custom_call.1
$region0: #{tpu_custom_call.1}
  #allocation0 [shape = 'u32[]', space=smem, size = 0x4, offset = 0x4, fixed_abs, tag = 'smem constant byte address 0x4 - core index']
  #allocation1 [shape = 'u32[144,128]{1,0:T(1,128)}', space=vmem, size = 0x12000, scoped, tag = 'internal scratch']
  %s0 = inlined_call_operand.hbm [shape: f32[2,8,128], index: 0, kind: input, shape index: {}]
  %s1 = inlined_call_operand.hbm [shape: f32[2,8,128], index: 1, kind: input, shape index: {}]
  %s2 = inlined_call_operand.hbm [shape: f32[1,8,128], index: 2, kind: output, shape index: {0}]
  %s3 = inlined_call_operand.hbm [shape: f32[1,8,128], index: 3, kind: output, shape index: {1}]
  %4 = xla_tuple %s2, %s3
  %s5 = sld [smem:[#allocation0]]
  $region38: #{tpu_custom_call.1} parent=0
    _
  %s7 = ssub.s32 1, %s5
  %s8 = scalar_select 0, %s7, %s5
  $region1: #{tpu_custom_call.1} parent=0
    #allocation2 [shape = 'u8[8192]{0}', space=vmem, size = 0x2000, scoped, tag = 'input window, operand 0, single buffered']
    #allocation3 [shape = 's32[1]{0}', space=sflag, size = 0x4, scoped, tag = 'scoped memory for tpu_custom_call.1']
    #allocation4 [shape = 's32[1]{0}', space=sflag, size = 0x4, scoped, tag = 'scoped memory for tpu_custom_call.1']
    #allocation5 [shape = 'u8[8192]{0}', space=vmem, size = 0x2000, scoped, tag = 'input window, operand 1, single buffered']
    #allocation6 [shape = 's32[1]{0}', space=sflag, size = 0x4, scoped, tag = 'scoped memory for tpu_custom_call.1']
    #allocation7 [shape = 'u8[4096]{0}', space=vmem, size = 0x1000, scoped, tag = 'output window, operand 0, single buffered']
    #allocation8 [shape = 'u8[4096]{0}', space=vmem, size = 0x1000, scoped, tag = 'output window, operand 1, single buffered']
    #allocation9 [shape = 's32[1]{0}', space=sflag, size = 0x4, scoped, tag = 'scoped memory for tpu_custom_call.1']
    %9 = vsyncpa [#allocation3], 0
    %10 = vsyncpa [#allocation6], 0
    %11 = vsyncpa [#allocation4], 0
    %12 = vsyncpa [#allocation9], 0
    // Predicated region
    $region2: #{tpu_custom_call.1} parent=1 // pred_check
      _
    $region3: #{tpu_custom_call.1} parent=1 // pred_check_branch
      %14 = sbr.rel (0) target = $region5
    $region4: #{tpu_custom_call.1} parent=1 // pred_region
      %s15 = sadd.s32 0, 0
      %s16 = smul.u32 2, %s15
      %s18 = ssub.s32 256, 256
      %19 = vsyncadd [#allocation3], %s18
      %s20 = smul.addr %s16, 128
      %s21 = scalar_lea.hbm %s0, %s20
      %s22 = sshll.u32 [#allocation2], 4
      %s23 = int_to_ptr.vmem [resolvable:$true] %s22
      %28 = dma.hbm_to_vmem [thread:$0]  %s21, 256, %s23, [#allocation3], 128, 128, 8
    $region5: #{tpu_custom_call.1} parent=1 // pred_fallthru
      _
    // Predicated region
    $region6: #{tpu_custom_call.1} parent=1 // pred_check
      _
    $region7: #{tpu_custom_call.1} parent=1 // pred_check_branch
      %30 = sbr.rel (0) target = $region9
    $region8: #{tpu_custom_call.1} parent=1 // pred_region
      %s31 = sadd.s32 0, 0
      %s32 = smul.u32 2, %s31
      %s34 = ssub.s32 256, 256
      %35 = vsyncadd [#allocation6], %s34
      %s36 = smul.addr %s32, 128
      %s37 = scalar_lea.hbm %s1, %s36
      %s38 = sshll.u32 [#allocation5], 4
      %s39 = int_to_ptr.vmem [resolvable:$true] %s38
      %44 = dma.hbm_to_vmem [thread:$0]  %s37, 256, %s39, [#allocation6], 128, 128, 8
    $region9: #{tpu_custom_call.1} parent=1 // pred_fallthru
      _
    // Predicated region
    $region10: #{tpu_custom_call.1} parent=1 // pred_check
      _
    $region11: #{tpu_custom_call.1} parent=1 // pred_check_branch
      %46 = sbr.rel (0) target = $region13
    $region12: #{tpu_custom_call.1} parent=1 // pred_region
      %47 = dma.done [#allocation3], 256
    $region13: #{tpu_custom_call.1} parent=1 // pred_fallthru
      _
    // Predicated region
    $region14: #{tpu_custom_call.1} parent=1 // pred_check
      _
    $region15: #{tpu_custom_call.1} parent=1 // pred_check_branch
      %49 = sbr.rel (0) target = $region17
    $region16: #{tpu_custom_call.1} parent=1 // pred_region
      %50 = dma.done [#allocation6], 256
    $region17: #{tpu_custom_call.1} parent=1 // pred_fallthru
      _
    %s51 = sadd.s32 0, 0
    %s52 = smul.u32 2, %s51
    %s53 = sadd.s32 0, 0
    %s54 = smul.u32 2, %s53
    %p55 = scmp.eq.s32.totalorder 0, 0
    // Predicated region
    $region18: #{tpu_custom_call.1} parent=1 // pred_check
      %p56 = pneg %p55
    $region19: #{tpu_custom_call.1} parent=1 // pred_check_branch
      %58 = sbr.rel (%p56) target = $region21
    $region20: #{tpu_custom_call.1} parent=1 // pred_region
      %59 = vst [vmem:[#allocation7] sm:$0xff] 0.0
      %60 = vst [vmem:[#allocation8] sm:$0xff] 0.0
    $region21: #{tpu_custom_call.1} parent=1 // pred_fallthru
      _
    %v61 = vld [vmem:[#allocation2] sm:$0xff]
    %v62 = vld [vmem:[#allocation2 + $0x8] sm:$0xff]
    %v63 = vld [vmem:[#allocation5] sm:$0xff]
    %v64 = vld [vmem:[#allocation5 + $0x8] sm:$0xff]
    %v65 = vsub.f32 %v61, %v63
    %v66 = vsub.f32 %v62, %v64
    %v67 = vld [vmem:[#allocation7] sm:$0xff]
    %v68 = vand.u32 2147483647, %v65
    %v69 = vand.u32 2147483647, %v66
    %v70 = vadd.f32 %v68, %v69
    %v71 = vadd.f32 %v67, %v70
    %72 = vst [vmem:[#allocation7] sm:$0xff] %v71
    %v73 = vld [vmem:[#allocation8] sm:$0xff]
    %v74 = vmul.f32 %v65, %v65
    %v75 = vmul.f32 %v66, %v66
    %v76 = vadd.f32 %v74, %v75
    %v77 = vadd.f32 %v73, %v76
    %78 = vst [vmem:[#allocation8] sm:$0xff] %v77
    // Predicated region
    $region22: #{tpu_custom_call.1} parent=1 // pred_check
      _
    $region23: #{tpu_custom_call.1} parent=1 // pred_check_branch
      %80 = sbr.rel (0) target = $region25
    $region24: #{tpu_custom_call.1} parent=1 // pred_region
      %s82 = ssub.s32 128, 128
      %83 = vsyncadd [#allocation4], %s82
      %s85 = sshll.u32 [#allocation7], 4
      %s86 = int_to_ptr.vmem [resolvable:$true] %s85
      %88 = dma.vmem_to_hbm [thread:$0]  %s86, 128, %s2, [#allocation4]
    $region25: #{tpu_custom_call.1} parent=1 // pred_fallthru
      _
    // Predicated region
    $region26: #{tpu_custom_call.1} parent=1 // pred_check
      _
    $region27: #{tpu_custom_call.1} parent=1 // pred_check_branch
      %90 = sbr.rel (0) target = $region29
    $region28: #{tpu_custom_call.1} parent=1 // pred_region
      %s92 = ssub.s32 128, 128
      %93 = vsyncadd [#allocation9], %s92
      %s95 = sshll.u32 [#allocation8], 4
      %s96 = int_to_ptr.vmem [resolvable:$true] %s95
      %98 = dma.vmem_to_hbm [thread:$0]  %s96, 128, %s3, [#allocation9]
    $region29: #{tpu_custom_call.1} parent=1 // pred_fallthru
      _
    // Predicated region
    $region30: #{tpu_custom_call.1} parent=1 // pred_check
      _
    $region31: #{tpu_custom_call.1} parent=1 // pred_check_branch
      %100 = sbr.rel (0) target = $region33
    $region32: #{tpu_custom_call.1} parent=1 // pred_region
      %101 = dma.done [#allocation4], 128
    $region33: #{tpu_custom_call.1} parent=1 // pred_fallthru
      _
    // Predicated region
    $region34: #{tpu_custom_call.1} parent=1 // pred_check
      _
    $region35: #{tpu_custom_call.1} parent=1 // pred_check_branch
      %103 = sbr.rel (0) target = $region37
    $region36: #{tpu_custom_call.1} parent=1 // pred_region
      %104 = dma.done [#allocation9], 128
    $region37: #{tpu_custom_call.1} parent=1 // pred_fallthru
      _
    %105 = vsyncpa [#allocation3], 1
    %106 = vsyncpa [#allocation6], 1
    %107 = vsyncpa [#allocation4], 1
    %108 = vsyncpa [#allocation9], 1

</llo_original>
